<compile_context>
chip_gen: v7x
topology: tpu7x:2x2x1
jax: 0.10.0
libtpu: 0.0.40
codegen_flags: <defaults>
</compile_context>

<pallas_src>
import functools

import jax
import jax.numpy as jnp
import numpy as np
from jax import lax
from jax.experimental import pallas as pl
from jax.experimental.pallas import tpu as pltpu


def _round_up(x, m):
    return ((x + m - 1) // m) * m


# ----------------------------------------------------------------------------
# Generation-aware VMEM budgeting
# ----------------------------------------------------------------------------
def _vmem_usable_bytes():
    """Physical VMEM minus headroom for compiler scratch / small buffers.

    v5e/v6e (128 MiB) -> ~100 MiB usable, v7x (64 MiB/TC) -> 48 MiB usable.
    Falls back to the v7x-safe value if the hardware query is unavailable.
    """
    try:
        phys = int(pltpu.get_tpu_info().vmem_capacity_bytes)
    except Exception:
        phys = 64 << 20
    return int(max(min(phys - (16 << 20), 100 << 20), 32 << 20))


def _use_bf16_compute(dtype):
    """bf16 VALU/EUP fast path only where the VPU natively supports bf16."""
    if jnp.dtype(dtype) != jnp.dtype(jnp.bfloat16):
        return False
    try:
        kind = jax.devices()[0].device_kind.lower()
    except Exception:
        return False
    return ("v6" in kind) or ("v7" in kind)


_F32_TEMP_BYTES = 12  # ~3 f32 temporaries (cast / masked select / exp) per elem


def _ce_tile_bytes(rows, cols, itemsize):
    # double-buffered input tile + in-kernel temporaries (+ small row vectors)
    return rows * cols * (2 * itemsize + _F32_TEMP_BYTES) + (256 << 10)


def _choose_ce_tiles(n_rows, n_classes, itemsize, usable):
    tm = _round_up(min(512, max(8, n_rows)), 8)
    # Prefer untiled C (single softmax chunk) while tm stays DMA-efficient.
    tm_full = tm
    while tm_full > 128 and _ce_tile_bytes(tm_full, n_classes, itemsize) > usable:
        tm_full = _round_up(tm_full // 2, 8)
    if _ce_tile_bytes(tm_full, n_classes, itemsize) <= usable:
        return tm_full, n_classes
    # Huge vocabulary: tile C (online logsumexp) and keep a large row tile.
    tm = min(tm, 256)
    tc = (usable - (256 << 10)) // (tm * (2 * itemsize + _F32_TEMP_BYTES))
    tc = max(128, (tc // 128) * 128)
    tc = min(tc, _round_up(n_classes, 128))
    while tm > 8 and _ce_tile_bytes(tm, tc, itemsize) > usable:
        tm = _round_up(tm // 2, 8)
    return tm, tc


# ----------------------------------------------------------------------------
# Kernel 1: per-token CE (ignore_index=0, reduction='none') + per-row logsumexp
#           C-tiled online logsumexp; optional bf16 compute path.
# ----------------------------------------------------------------------------
def _ce_kernel(logits_ref, tgt_ref, loss_ref, lse_ref, m_sc, l_sc, p_sc,
               *, num_classes, need_col_mask, fast_lowp):
    ci = pl.program_id(1)

    @pl.when(ci == 0)
    def _init():
        m_sc[...] = jnp.full(m_sc.shape, -jnp.inf, m_sc.dtype)
        l_sc[...] = jnp.zeros(l_sc.shape, l_sc.dtype)
        p_sc[...] = jnp.zeros(p_sc.shape, p_sc.dtype)

    x = logits_ref[...]                       # (tm, tc) model dtype
    if not fast_lowp:
        x = x.astype(jnp.float32)             # upcast in VMEM; HBM stays narrow
    cdt = x.dtype
    tgt = tgt_ref[...]                        # (tm, 1) int32

    tc = x.shape[-1]
    class_ids = ci * tc + lax.broadcasted_iota(jnp.int32, x.shape, 1)
    if need_col_mask:                         # ragged last class chunk
        x = jnp.where(class_ids < num_classes, x, -jnp.inf)

    # logit of the target class: exact one-hot select, accumulated over chunks
    picked = jnp.sum(jnp.where(class_ids == tgt, x, 0.0),
                     axis=-1, keepdims=True)
    p_sc[...] += picked.astype(jnp.float32)

    # online logsumexp: running max + rescaled partial sum (f32 state)
    m_prev = m_sc[...]
    m_new = jnp.maximum(
        m_prev, jnp.max(x, axis=-1, keepdims=True).astype(jnp.float32))
    xm = x - m_new.astype(cdt)                # bf16 VALU on v6e/v7x fast path
    sumexp = jnp.sum(jnp.exp(xm.astype(jnp.float32)), axis=-1, keepdims=True)
    l_sc[...] = l_sc[...] * jnp.exp(m_prev - m_new) + sumexp
    m_sc[...] = m_new

    @pl.when(ci == pl.num_programs(1) - 1)
    def _finish():
        lse = m_sc[...] + jnp.log(l_sc[...])
        loss = lse - p_sc[...]
        # Rows beyond N in a ragged last row-block hold garbage; they are
        # sliced away by the wrapper and never reduced over in-kernel.
        loss_ref[...] = jnp.where(tgt == 0, 0.0, loss)
        lse_ref[...] = lse


def ce_ignore0_with_lse(logits, targets, *, tm=None, tc=None, fast_lowp=None):
    """Per-token CE (ignore_index=0, reduction='none') + per-row logsumexp.

    logits : (N, C) float (kept in model dtype in HBM; upcast happens in VMEM)
    targets: (N,)   int
    returns: (loss, lse), both (N,) float32.  `lse` is valid for every row,
             including ignored (target == 0) positions.
    """
    N, C = logits.shape
    itemsize = jnp.dtype(logits.dtype).itemsize
    usable = _vmem_usable_bytes()

    auto_tm, auto_tc = _choose_ce_tiles(N, C, itemsize, usable)
    tm = auto_tm if tm is None else tm
    tc = auto_tc if tc is None else tc
    if fast_lowp is None:
        fast_lowp = _use_bf16_compute(logits.dtype)

    nb = pl.cdiv(N, tm)
    nc = pl.cdiv(C, tc)
    Np = nb * tm

    tgt2 = targets.astype(jnp.int32).reshape(N, 1)

    kernel = functools.partial(
        _ce_kernel, num_classes=C, need_col_mask=(nc * tc != C),
        fast_lowp=fast_lowp)

    cost = pl.CostEstimate(
        flops=6 * N * C,
        transcendentals=N * C,
        bytes_accessed=N * C * itemsize + 12 * N)

    loss, lse = pl.pallas_call(
        kernel,
        out_shape=(jax.ShapeDtypeStruct((Np, 1), jnp.float32),
                   jax.ShapeDtypeStruct((Np, 1), jnp.float32)),
        grid=(nb, nc),
        in_specs=[pl.BlockSpec((tm, tc), lambda i, c: (i, c)),
                  pl.BlockSpec((tm, 1), lambda i, c: (i, 0))],
        out_specs=(pl.BlockSpec((tm, 1), lambda i, c: (i, 0)),
                   pl.BlockSpec((tm, 1), lambda i, c: (i, 0))),
        scratch_shapes=[pltpu.VMEM((tm, 1), jnp.float32),
                        pltpu.VMEM((tm, 1), jnp.float32),
                        pltpu.VMEM((tm, 1), jnp.float32)],
        compiler_params=pltpu.CompilerParams(
            dimension_semantics=("parallel", "arbitrary"),
            vmem_limit_bytes=usable),
        cost_estimate=cost,
    )(logits, tgt2)
    return loss[:N, 0], lse[:N, 0]


# ----------------------------------------------------------------------------
# Kernel 2: smoothing pass — weighted CE over candidates that reuse rows of the
# original logits (scalar-prefetch row index) and the precomputed logsumexp.
# ----------------------------------------------------------------------------
def _cand_kernel(row_idx_ref, logits_ref, lse_ref, tgt_ref, w_ref, out_ref):
    del row_idx_ref                               # consumed by the index_maps
    x = logits_ref[0]                             # (ts, C) model dtype
    tgt = tgt_ref[0]                              # (ts, 1) int32
    w = w_ref[0]                                  # (ts, 1) f32
    lse = lse_ref[0]                              # (ts, 1) f32

    class_ids = lax.broadcasted_iota(jnp.int32, x.shape, 1)
    picked = jnp.sum(jnp.where(class_ids == tgt, x, 0.0),
                     axis=-1, keepdims=True).astype(jnp.float32)
    out_ref[0] = jnp.where(tgt == 0, 0.0, w * (lse - picked))


def candidate_ce_ignore0(row_idx, inputs, lse, targets, weights, *, ts=None):
    """Weighted CE for candidate target strings that share rows of `inputs`.

    NOTE: candidates MUST be grouped (sorted) by `row_idx` — consecutive grid
    steps with an identical logits block index let the Pallas pipeline skip the
    re-DMA of the shared (S, C) row, which is the whole point of the
    scalar-prefetch dedup.

    row_idx : (ncand,)   int32 — row of `inputs`/`lse` each candidate reads
    inputs  : (B, S, C)  logits (model dtype)
    lse     : (B, S)     float32 per-position logsumexp from the main CE kernel
    targets : (ncand, S) int
    weights : (ncand, S) float
    returns : (ncand, S) float32 weighted per-token losses (0 at ignored pos.)
    """
    B, S, C = inputs.shape
    ncand = targets.shape[0]
    itemsize = jnp.dtype(inputs.dtype).itemsize
    usable = _vmem_usable_bytes()

    if ts is None:
        ts = S                                   # full row preserves DMA dedup
        while ts > 8 and _ce_tile_bytes(ts, C, itemsize) > usable:
            ts = _round_up(ts // 2, 8)
    ns = pl.cdiv(S, ts)
    Sp = ns * ts

    tgt = targets.astype(jnp.int32)
    w = weights.astype(jnp.float32)
    if Sp != S:
        # Pad only the cheap per-token arrays; padded positions carry target 0
        # so the ragged logits/lse reads beyond S only feed masked rows.
        tgt = jnp.pad(tgt, ((0, 0), (0, Sp - S)))
        w = jnp.pad(w, ((0, 0), (0, Sp - S)))
    tgt3 = tgt.reshape(ncand, Sp, 1)
    w3 = w.reshape(ncand, Sp, 1)
    lse3 = lse.reshape(B, S, 1)

    cost = pl.CostEstimate(
        flops=3 * ncand * S * C,
        transcendentals=0,
        bytes_accessed=ncand * S * C * itemsize + 12 * ncand * S)

    out = pl.pallas_call(
        _cand_kernel,
        out_shape=jax.ShapeDtypeStruct((ncand, Sp, 1), jnp.float32),
        grid_spec=pltpu.PrefetchScalarGridSpec(
            num_scalar_prefetch=1,
            grid=(ncand, ns),
            in_specs=[
                pl.BlockSpec((1, ts, C), lambda i, si, ridx: (ridx[i], si, 0)),
                pl.BlockSpec((1, ts, 1), lambda i, si, ridx: (ridx[i], si, 0)),
                pl.BlockSpec((1, ts, 1), lambda i, si, ridx: (i, si, 0)),
                pl.BlockSpec((1, ts, 1), lambda i, si, ridx: (i, si, 0)),
            ],
            out_specs=pl.BlockSpec((1, ts, 1), lambda i, si, ridx: (i, si, 0)),
        ),
        compiler_params=pltpu.CompilerParams(
            dimension_semantics=("parallel", "parallel"),
            vmem_limit_bytes=usable),
        cost_estimate=cost,
    )(row_idx, inputs, lse3, tgt3, w3)
    return out[:, :S, 0]


# ----------------------------------------------------------------------------
# Forward pass matching SequenceSmoothLoss_hard_depend_loss.forward
# ----------------------------------------------------------------------------
def sequence_smooth_loss_forward(inputs, target, gt_strs, encode, length,
                                 smooth_matrix, alpha=0.05):
    """inputs: (B, S, C) logits, target: (B, S) int, length: (B,) int."""
    B, S, C = inputs.shape
    norm_len = length.sum()

    # main cross-entropy + per-position logsumexp (Pallas kernel 1)
    per_tok, lse = ce_ignore0_with_lse(inputs.reshape(-1, C),
                                       target.reshape(-1))

    cost_for_refer = lax.stop_gradient(per_tok).reshape(B, -1).sum(-1) / length
    cost = per_tok.sum() / norm_len

    smoothings = jnp.power(cost_for_refer, 0.25) * alpha
    smoothings = jnp.where(cost_for_refer > 1, smoothings * 2.0, smoothings)

    # ---- candidate expansion driven by the Python smoothing_map dict --------
    # Only small index / target / scale arrays are built; the logits are NOT
    # duplicated, and candidates stay grouped by source row (DMA-dedup req.).
    row_ids, target_rows, scales = [], [], []
    norm_len2 = 0
    for idx, gt in enumerate(gt_strs):
        if gt in smooth_matrix and len(smooth_matrix[gt]) > 0:
            candidate_dict = smooth_matrix[gt]
            sum_num = sum(candidate_dict.values())
            for k, v in candidate_dict.items():
                text, enc_len = encode([k], batch_max_length=S)
                row_ids.append(idx)
                target_rows.append(text[:, 1:])            # (1, S)
                scales.append(v / sum_num)
                norm_len2 += enc_len

    if not row_ids:
        return cost

    ncand = len(row_ids)
    row_idx = jnp.asarray(row_ids, dtype=jnp.int32)                    # (ncand,)
    tgt2 = jnp.concatenate(target_rows, axis=0).astype(jnp.int32)      # (ncand,S)
    scale = jnp.asarray(scales, dtype=jnp.float32)                     # (ncand,)
    w2 = jnp.broadcast_to((scale * smoothings[row_idx])[:, None],
                          (ncand, S)).astype(jnp.float32)              # (ncand,S)

    # host-side sanity check: a candidate id >= C would silently yield a wrong
    # (finite) loss through the one-hot select.
    try:
        max_id = int(jnp.max(tgt2))
    except Exception:
        max_id = None
    if max_id is not None and max_id >= C:
        raise ValueError("candidate target id >= number of classes")

    # smoothing-weighted CE over candidates (Pallas kernel 2, lse reused)
    per_tok2 = candidate_ce_ignore0(row_idx, inputs, lse.reshape(B, S),
                                    tgt2, w2)
    cost_ls = per_tok2.sum() / norm_len2
    return cost + cost_ls


# ----------------------------------------------------------------------------
# Pure-JAX references (correctness checks)
# ----------------------------------------------------------------------------
def _ce_ignore0_ref(logits, targets):
    logp = jax.nn.log_softmax(logits.astype(jnp.float32), axis=-1)
    picked = jnp.take_along_axis(logp, targets[:, None].astype(jnp.int32),
                                 axis=-1)[:, 0]
    return jnp.where(targets == 0, 0.0, -picked)


def _lse_ref(logits):
    return jax.scipy.special.logsumexp(logits.astype(jnp.float32), axis=-1)


def sequence_smooth_loss_forward_ref(inputs, target, gt_strs, encode, length,
                                     smooth_matrix, alpha=0.05):
    B, S, C = inputs.shape
    norm_len = length.sum()
    per_tok = _ce_ignore0_ref(inputs.reshape(-1, C), target.reshape(-1))
    cost_for_refer = per_tok.reshape(B, -1).sum(-1) / length
    cost = per_tok.sum() / norm_len
    smoothings = jnp.power(cost_for_refer, 0.25) * alpha
    smoothings = jnp.where(cost_for_refer > 1, smoothings * 2.0, smoothings)

    norm_len2 = 0
    input_ls, target_ls, smoothing_ls = [], [], []
    for idx, gt in enumerate(gt_strs):
        if gt in smooth_matrix and len(smooth_matrix[gt]) > 0:
            candidate_dict = smooth_matrix[gt]
            sum_num = sum(candidate_dict.values())
            for k, v in candidate_dict.items():
                text, enc_len = encode([k], batch_max_length=S)
                input_ls.append(inputs[idx])                     # (S, C)
                target_ls.append(text[:, 1:])                    # (1, S)
                norm_len2 += enc_len
                smoothing_ls.append((v / sum_num) * smoothings[idx]
                                    * jnp.ones_like(text[:, 1:],
                                                    dtype=jnp.float32))

    target2 = jnp.concatenate(target_ls, axis=0)
    input2 = jnp.stack(input_ls, axis=0)
    smoothing2 = jnp.concatenate(smoothing_ls, axis=0)
    per2 = _ce_ignore0_ref(input2.reshape(-1, C), target2.reshape(-1))
    cost_ls = (smoothing2.reshape(-1) * per2).sum() / norm_len2
    return cost + cost_ls


# ----------------------------------------------------------------------------
# Example setup
# ----------------------------------------------------------------------------
def make_encoder():
    """Deterministic synthetic char-level encoder: 'a'..'z' -> 1..26, [GO]=0."""
    def encode(strs, batch_max_length=25):
        texts = []
        total_len = 0
        for s in strs:
            ids = [0] + [((ord(c) - ord('a')) % 26) + 1 for c in s]
            ids = ids[: batch_max_length + 1]
            ids = ids + [0] * (batch_max_length + 1 - len(ids))
            texts.append(ids)
            total_len += len(s)
        return jnp.array(texts, dtype=jnp.int32), total_len
    return encode


if __name__ == "__main__":
    key = jax.random.PRNGKey(0)
    B, S, C = 2, 8, 32  # batch, sequence length, num classes

    alpha = 0.05
    smooth_matrix = {
        "abc": {"abd": 2, "abcd": 1},
        "de": {"dee": 1},
    }

    encode = make_encoder()
    gt_strs = ["abc", "de"]

    # targets derived from the ground-truth strings (0 = padding / ignore)
    target = jnp.stack([encode([s], batch_max_length=S)[0][0, 1:]
                        for s in gt_strs], axis=0)                  # (B, S)
    length = jnp.array([len(s) for s in gt_strs], dtype=jnp.int32)  # (B,)

    # deterministic logits
    inputs = jax.random.normal(key, (B, S, C), dtype=jnp.float32)

    # ---- end-to-end forward (Pallas kernels inside) -------------------------
    loss = sequence_smooth_loss_forward(
        inputs, target, gt_strs, encode, length, smooth_matrix, alpha)
    loss = jax.block_until_ready(loss)

    # ---- kernel-level checks: main CE + logsumexp ---------------------------
    flat_x = inputs.reshape(-1, C)
    flat_t = target.reshape(-1)
    ker_loss, ker_lse = ce_ignore0_with_lse(flat_x, flat_t)
    np.testing.assert_allclose(np.asarray(ker_loss),
                               np.asarray(_ce_ignore0_ref(flat_x, flat_t)),
                               rtol=1e-5, atol=1e-5)
    np.testing.assert_allclose(np.asarray(ker_lse),
                               np.asarray(_lse_ref(flat_x)),
                               rtol=1e-5, atol=1e-5)

    # ---- C-tiled online-logsumexp path (nc > 1), forced small tiles ---------
    xb = jax.random.normal(jax.random.PRNGKey(1), (16, 256),
                           dtype=jnp.float32) * 3.0
    tb = jax.random.randint(jax.random.PRNGKey(2), (16,), 0, 256)
    kb_loss, kb_lse = ce_ignore0_with_lse(xb, tb, tm=16, tc=128)
    np.testing.assert_allclose(np.asarray(kb_loss),
                               np.asarray(_ce_ignore0_ref(xb, tb)),
                               rtol=1e-5, atol=1e-5)
    np.testing.assert_allclose(np.asarray(kb_lse), np.asarray(_lse_ref(xb)),
                               rtol=1e-5, atol=1e-5)

    # ---- bf16 path (bf16 VALU on v6e/v7x, f32 fallback on v5e) --------------
    xh = flat_x.astype(jnp.bfloat16)
    kh_loss, _ = ce_ignore0_with_lse(xh, flat_t)
    np.testing.assert_allclose(np.asarray(kh_loss),
                               np.asarray(_ce_ignore0_ref(xh, flat_t)),
                               rtol=2e-2, atol=2e-2)

    # ---- end-to-end check of the whole forward against a pure-JAX reference -
    loss_ref = sequence_smooth_loss_forward_ref(
        inputs, target, gt_strs, encode, length, smooth_matrix, alpha)
    np.testing.assert_allclose(float(loss), float(loss_ref),
                               rtol=1e-4, atol=1e-5)
    assert np.isfinite(float(loss))

    print("KERNEL_OK")
</pallas_src>

<mosaic_0001>
module attributes {stable_mosaic.version = 11 : i64} {
  func.func @_ce_kernel(%arg0: i32, %arg1: i32, %arg2: memref<16x32xf32, #tpu.memory_space<vmem>>, %arg3: memref<16x1xi32, #tpu.memory_space<vmem>>, %arg4: memref<16x1xf32, #tpu.memory_space<vmem>>, %arg5: memref<16x1xf32, #tpu.memory_space<vmem>>, %arg6: memref<16x1xf32, #tpu.memory_space<vmem>>, %arg7: memref<16x1xf32, #tpu.memory_space<vmem>>, %arg8: memref<16x1xf32, #tpu.memory_space<vmem>>) attributes {dimension_semantics = [#tpu.dimension_semantics<parallel>, #tpu.dimension_semantics<arbitrary>], iteration_bounds = array<i64: 1, 1>, scalar_prefetch = 0 : i64, scratch_operands = 3 : i64, tpu.core_type = #tpu.core_type<tc>, window_params = [{transform_indices = @transform_0, window_bounds = array<i64: 16, 32>}, {transform_indices = @transform_1, window_bounds = array<i64: 16, 1>}, {transform_indices = @transform_2, window_bounds = array<i64: 16, 1>}, {transform_indices = @transform_3, window_bounds = array<i64: 16, 1>}]} {
    %c0_i32 = arith.constant 0 : i32
    %0 = arith.cmpi eq, %arg1, %c0_i32 : i32
    %1 = arith.extui %0 : i1 to i32
    %c0_i32_0 = arith.constant 0 : i32
    %2 = arith.cmpi ne, %1, %c0_i32_0 : i32
    scf.if %2 {
      %cst_21 = arith.constant 0xFF800000 : f32
      %37 = vector.broadcast %cst_21 : f32 to vector<16x1xf32>
      %c0_22 = arith.constant 0 : index
      %c0_23 = arith.constant 0 : index
      %38 = vector.load %arg6[%c0_22, %c0_23] : memref<16x1xf32, #tpu.memory_space<vmem>>, vector<16x1xf32>
      tpu.vector_store %arg6[%c0_22, %c0_23], %37 {strides = array<i32>} : memref<16x1xf32, #tpu.memory_space<vmem>>, vector<16x1xf32>,
      %cst_24 = arith.constant 0.000000e+00 : f32
      %39 = vector.broadcast %cst_24 : f32 to vector<16x1xf32>
      %c0_25 = arith.constant 0 : index
      %c0_26 = arith.constant 0 : index
      %40 = vector.load %arg7[%c0_25, %c0_26] : memref<16x1xf32, #tpu.memory_space<vmem>>, vector<16x1xf32>
      tpu.vector_store %arg7[%c0_25, %c0_26], %39 {strides = array<i32>} : memref<16x1xf32, #tpu.memory_space<vmem>>, vector<16x1xf32>,
      %cst_27 = arith.constant 0.000000e+00 : f32
      %41 = vector.broadcast %cst_27 : f32 to vector<16x1xf32>
      %c0_28 = arith.constant 0 : index
      %c0_29 = arith.constant 0 : index
      %42 = vector.load %arg8[%c0_28, %c0_29] : memref<16x1xf32, #tpu.memory_space<vmem>>, vector<16x1xf32>
      tpu.vector_store %arg8[%c0_28, %c0_29], %41 {strides = array<i32>} : memref<16x1xf32, #tpu.memory_space<vmem>>, vector<16x1xf32>,
    } else {
    }
    %c0 = arith.constant 0 : index
    %c0_1 = arith.constant 0 : index
    %3 = vector.load %arg2[%c0, %c0_1] : memref<16x32xf32, #tpu.memory_space<vmem>>, vector<16x32xf32>
    %c0_2 = arith.constant 0 : index
    %c0_3 = arith.constant 0 : index
    %4 = vector.load %arg3[%c0_2, %c0_3] : memref<16x1xi32, #tpu.memory_space<vmem>>, vector<16x1xi32>
    %c32_i32 = arith.constant 32 : i32
    %5 = arith.muli %arg1, %c32_i32 : i32
    %6 = tpu.iota {dimensions = array<i32: 1>} : vector<16x32xi32>
    %7 = vector.broadcast %5 : i32 to vector<16x32xi32>
    %8 = arith.addi %7, %6 : vector<16x32xi32>
    %9 = vector.broadcast %4 : vector<16x1xi32> to vector<16x32xi32>
    %10 = arith.cmpi eq, %8, %9 : vector<16x32xi32>
    %cst = arith.constant 0.000000e+00 : f32
    %11 = vector.broadcast %cst : f32 to vector<16x32xf32>
    %12 = arith.select %10, %3, %11 : vector<16x32xi1>, vector<16x32xf32>
    %cst_4 = arith.constant dense<0.000000e+00> : vector<16xf32>
    %13 = vector.multi_reduction <add>, %12, %cst_4 [1] : vector<16x32xf32> to vector<16xf32>
    %14 = vector.shape_cast %13 : vector<16xf32> to vector<16x1xf32>
    %c0_5 = arith.constant 0 : index
    %c0_6 = arith.constant 0 : index
    %15 = vector.load %arg8[%c0_5, %c0_6] : memref<16x1xf32, #tpu.memory_space<vmem>>, vector<16x1xf32>
    %16 = arith.addf %15, %14 : vector<16x1xf32>
    %c0_7 = arith.constant 0 : index
    %c0_8 = arith.constant 0 : index
    %17 = vector.load %arg8[%c0_7, %c0_8] : memref<16x1xf32, #tpu.memory_space<vmem>>, vector<16x1xf32>
    tpu.vector_store %arg8[%c0_7, %c0_8], %16 {strides = array<i32>} : memref<16x1xf32, #tpu.memory_space<vmem>>, vector<16x1xf32>,
    %c0_9 = arith.constant 0 : index
    %c0_10 = arith.constant 0 : index
    %18 = vector.load %arg6[%c0_9, %c0_10] : memref<16x1xf32, #tpu.memory_space<vmem>>, vector<16x1xf32>
    %cst_11 = arith.constant dense<0xFF800000> : vector<16xf32>
    %19 = vector.multi_reduction <maximumf>, %3, %cst_11 [1] : vector<16x32xf32> to vector<16xf32>
    %20 = vector.shape_cast %19 : vector<16xf32> to vector<16x1xf32>
    %21 = arith.maximumf %18, %20 : vector<16x1xf32>
    %22 = vector.broadcast %21 : vector<16x1xf32> to vector<16x32xf32>
    %23 = arith.subf %3, %22 : vector<16x32xf32>
    %24 = math.exp %23 : vector<16x32xf32>
    %cst_12 = arith.constant dense<0.000000e+00> : vector<16xf32>
    %25 = vector.multi_reduction <add>, %24, %cst_12 [1] : vector<16x32xf32> to vector<16xf32>
    %26 = vector.shape_cast %25 : vector<16xf32> to vector<16x1xf32>
    %c0_13 = arith.constant 0 : index
    %c0_14 = arith.constant 0 : index
    %27 = vector.load %arg7[%c0_13, %c0_14] : memref<16x1xf32, #tpu.memory_space<vmem>>, vector<16x1xf32>
    %28 = arith.subf %18, %21 : vector<16x1xf32>
    %29 = math.exp %28 : vector<16x1xf32>
    %30 = arith.mulf %27, %29 : vector<16x1xf32>
    %31 = arith.addf %30, %26 : vector<16x1xf32>
    %c0_15 = arith.constant 0 : index
    %c0_16 = arith.constant 0 : index
    %32 = vector.load %arg7[%c0_15, %c0_16] : memref<16x1xf32, #tpu.memory_space<vmem>>, vector<16x1xf32>
    tpu.vector_store %arg7[%c0_15, %c0_16], %31 {strides = array<i32>} : memref<16x1xf32, #tpu.memory_space<vmem>>, vector<16x1xf32>,
    %c0_17 = arith.constant 0 : index
    %c0_18 = arith.constant 0 : index
    %33 = vector.load %arg6[%c0_17, %c0_18] : memref<16x1xf32, #tpu.memory_space<vmem>>, vector<16x1xf32>
    tpu.vector_store %arg6[%c0_17, %c0_18], %21 {strides = array<i32>} : memref<16x1xf32, #tpu.memory_space<vmem>>, vector<16x1xf32>,
    %c0_i32_19 = arith.constant 0 : i32
    %34 = arith.cmpi eq, %arg1, %c0_i32_19 : i32
    %35 = arith.extui %34 : i1 to i32
    %c0_i32_20 = arith.constant 0 : i32
    %36 = arith.cmpi ne, %35, %c0_i32_20 : i32
    scf.if %36 {
      %c0_21 = arith.constant 0 : index
      %c0_22 = arith.constant 0 : index
      %37 = vector.load %arg6[%c0_21, %c0_22] : memref<16x1xf32, #tpu.memory_space<vmem>>, vector<16x1xf32>
      %c0_23 = arith.constant 0 : index
      %c0_24 = arith.constant 0 : index
      %38 = vector.load %arg7[%c0_23, %c0_24] : memref<16x1xf32, #tpu.memory_space<vmem>>, vector<16x1xf32>
      %39 = math.log %38 : vector<16x1xf32>
      %40 = arith.addf %37, %39 : vector<16x1xf32>
      %c0_25 = arith.constant 0 : index
      %c0_26 = arith.constant 0 : index
      %41 = vector.load %arg8[%c0_25, %c0_26] : memref<16x1xf32, #tpu.memory_space<vmem>>, vector<16x1xf32>
      %42 = arith.subf %40, %41 : vector<16x1xf32>
      %c0_i32_27 = arith.constant 0 : i32
      %43 = vector.broadcast %c0_i32_27 : i32 to vector<16x1xi32>
      %44 = arith.cmpi eq, %4, %43 : vector<16x1xi32>
      %cst_28 = arith.constant 0.000000e+00 : f32
      %45 = vector.broadcast %cst_28 : f32 to vector<16x1xf32>
      %46 = arith.select %44, %45, %42 : vector<16x1xi1>, vector<16x1xf32>
      %c0_29 = arith.constant 0 : index
      %c0_30 = arith.constant 0 : index
      %47 = vector.load %arg4[%c0_29, %c0_30] : memref<16x1xf32, #tpu.memory_space<vmem>>, vector<16x1xf32>
      tpu.vector_store %arg4[%c0_29, %c0_30], %46 {strides = array<i32>} : memref<16x1xf32, #tpu.memory_space<vmem>>, vector<16x1xf32>,
      %c0_31 = arith.constant 0 : index
      %c0_32 = arith.constant 0 : index
      %48 = vector.load %arg5[%c0_31, %c0_32] : memref<16x1xf32, #tpu.memory_space<vmem>>, vector<16x1xf32>
      tpu.vector_store %arg5[%c0_31, %c0_32], %40 {strides = array<i32>} : memref<16x1xf32, #tpu.memory_space<vmem>>, vector<16x1xf32>,
    } else {
    }
    return
  }
  func.func @transform_0(%arg0: i32, %arg1: i32) -> (i32, i32) {
    %c0_i32 = arith.constant 0 : i32
    return %arg0, %arg1 : i32, i32
  }
  func.func @transform_1(%arg0: i32, %arg1: i32) -> (i32, i32) {
    %c0_i32 = arith.constant 0 : i32
    %c0_i32_0 = arith.constant 0 : i32
    return %arg0, %c0_i32 : i32, i32
  }
  func.func @transform_2(%arg0: i32, %arg1: i32) -> (i32, i32) {
    %c0_i32 = arith.constant 0 : i32
    %c0_i32_0 = arith.constant 0 : i32
    return %arg0, %c0_i32 : i32, i32
  }
  func.func @transform_3(%arg0: i32, %arg1: i32) -> (i32, i32) {
    %c0_i32 = arith.constant 0 : i32
    %c0_i32_0 = arith.constant 0 : i32
    return %arg0, %c0_i32 : i32, i32
  }
}

</mosaic_0001>

<llo_original>
// kernel: tpu_custom_call.1
$region0: #{tpu_custom_call.1}
  #allocation0 [shape = 'u32[]', space=smem, size = 0x4, offset = 0x4, fixed_abs, tag = 'smem constant byte address 0x4 - core index']
  #allocation1 [shape = 'u32[144,128]{1,0:T(1,128)}', space=vmem, size = 0x12000, scoped, tag = 'internal scratch']
  #allocation2 [shape = 'f32[16,1]{1,0:T(8,128)}', space=vmem, size = 0x2000, scoped, tag = 'scratch operand']
  #allocation3 [shape = 'f32[16,1]{1,0:T(8,128)}', space=vmem, size = 0x2000, scoped, tag = 'scratch operand']
  #allocation4 [shape = 'f32[16,1]{1,0:T(8,128)}', space=vmem, size = 0x2000, scoped, tag = 'scratch operand']
  %s0 = inlined_call_operand.vmem [shape: f32[16,32], index: 0, kind: input, shape index: {}]
  %s1 = inlined_call_operand.vmem [shape: s32[16,1], index: 1, kind: input, shape index: {}]
  %s2 = inlined_call_operand.vmem [shape: f32[16,1], index: 2, kind: output, shape index: {0}]
  %s3 = inlined_call_operand.vmem [shape: f32[16,1], index: 3, kind: output, shape index: {1}]
  %4 = xla_tuple %s2, %s3
  %s5 = sld [smem:[#allocation0]]
  $region34: #{tpu_custom_call.1} parent=0
    _
  %s7 = ssub.s32 1, %s5
  %s8 = scalar_select 0, %s7, %s5
  // Predicated region
  $region2: #{tpu_custom_call.1} parent=0 // pred_check
    _
  $region3: #{tpu_custom_call.1} parent=0 // pred_check_branch
    %10 = sbr.rel (0) target = $region5
  $region4: #{tpu_custom_call.1} parent=0 // pred_region
    _
  $region5: #{tpu_custom_call.1} parent=0 // pred_fallthru
    _
  // Predicated region
  $region6: #{tpu_custom_call.1} parent=0 // pred_check
    _
  $region7: #{tpu_custom_call.1} parent=0 // pred_check_branch
    %12 = sbr.rel (0) target = $region9
  $region8: #{tpu_custom_call.1} parent=0 // pred_region
    _
  $region9: #{tpu_custom_call.1} parent=0 // pred_fallthru
    _
  %p13 = scmp.eq.s32.totalorder 0, 0
  // Predicated region
  $region10: #{tpu_custom_call.1} parent=0 // pred_check
    %p14 = pneg %p13
  $region11: #{tpu_custom_call.1} parent=0 // pred_check_branch
    %16 = sbr.rel (%p14) target = $region13
  $region12: #{tpu_custom_call.1} parent=0 // pred_region
    %vm17 = vcmask 7168
    %18 = vst.msk [vmem:[#allocation2] sm:$0xff] %vm17, -inf
    %19 = vst.msk [vmem:[#allocation2 + $0x8] sm:$0xff] %vm17, -inf
    %20 = vst.msk [vmem:[#allocation3] sm:$0xff] %vm17, 0.0
    %21 = vst.msk [vmem:[#allocation3 + $0x8] sm:$0xff] %vm17, 0.0
    %22 = vst.msk [vmem:[#allocation4] sm:$0xff] %vm17, 0.0
    %23 = vst.msk [vmem:[#allocation4 + $0x8] sm:$0xff] %vm17, 0.0
  $region13: #{tpu_custom_call.1} parent=0 // pred_fallthru
    _
  %v24 = vld [vmem:[%s0] sm:$0xff]
  %v25 = vld [vmem:[%s0 + $0x8] sm:$0xff]
  %v26 = vld [vmem:[%s1] sm:$0xff]
  %v27 = vld [vmem:[%s1 + $0x8] sm:$0xff]
  %s28 = smul.u32 0, 32
  %v29 = vlaneseq
  %v30 = vand.u32 %v29, 127
  %v31 = vstv %s28
  %v32 = vadd.s32 %v31, %v30
  %33 = vset.pattern.permute.xlu0 0
  %34 = vperm.xlu0 %33, %v26
  %v35 = vpop.permute.xlu0 %34
  %36 = vset.pattern.permute.xlu0 0
  %37 = vperm.xlu0 %36, %v27
  %v38 = vpop.permute.xlu0 %37
  %vm39 = vcmp.eq.s32.totalorder %v32, %v35
  %vm40 = vcmp.eq.s32.totalorder %v32, %v38
  %v41 = vsel %vm39, %v24, 0.0
  %v42 = vsel %vm40, %v25, 0.0
  %vm43 = vcmask 261120
  %v44 = vsel %vm43, %v41, 0.0
  %45 = vadd.xlane.f32.xlu0 %v44
  %v46 = vpop.xlane.xlu0 %45
  %v47 = vsel %vm43, %v42, 0.0
  %48 = vadd.xlane.f32.xlu0 %v47
  %v49 = vpop.xlane.xlu0 %48
  %v50 = vld [vmem:[#allocation4] sm:$0xff]
  %v51 = vld [vmem:[#allocation4 + $0x8] sm:$0xff]
  %v52 = vadd.f32 %v50, %v46
  %v53 = vadd.f32 %v51, %v49
  %vm54 = vcmask 7168
  %55 = vst.msk [vmem:[#allocation4] sm:$0xff] %vm54, %v52
  %56 = vst.msk [vmem:[#allocation4 + $0x8] sm:$0xff] %vm54, %v53
  %v57 = vld [vmem:[#allocation2] sm:$0xff]
  %v58 = vld [vmem:[#allocation2 + $0x8] sm:$0xff]
  %v59 = vsel %vm43, %v24, -inf
  %60 = vmax.xlane.f32.xlu0 %v59
  %v61 = vpop.xlane.xlu0 %60
  %v62 = vsel %vm43, %v25, -inf
  %63 = vmax.xlane.f32.xlu0 %v62
  %v64 = vpop.xlane.xlu0 %63
  %v65 = vmax.f32 %v57, %v61
  %v66 = vmax.f32 %v58, %v64
  %68 = vset.pattern.permute.xlu0 0
  %69 = vperm.xlu0 %68, %v65
  %v70 = vpop.permute.xlu0 %69
  %73 = vset.pattern.permute.xlu0 0
  %74 = vperm.xlu0 %73, %v66
  %v75 = vpop.permute.xlu0 %74
  %v77 = vsub.f32 %v24, %v70
  %v78 = vsub.f32 %v25, %v75
  %v79 = vmul.f32 %v77, 1.442695
  %v80 = vpow.pop %v79
  %v81 = vmul.f32 %v78, 1.442695
  %v82 = vpow.pop %v81
  %v83 = vsel %vm43, %v80, 0.0
  %84 = vadd.xlane.f32.xlu0 %v83
  %v85 = vpop.xlane.xlu0 %84
  %v86 = vsel %vm43, %v82, 0.0
  %87 = vadd.xlane.f32.xlu0 %v86
  %v88 = vpop.xlane.xlu0 %87
  %v89 = vld [vmem:[#allocation3] sm:$0xff]
  %v90 = vld [vmem:[#allocation3 + $0x8] sm:$0xff]
  %v91 = vsub.f32 %v57, %v65
  %v92 = vsub.f32 %v58, %v66
  %v93 = vmul.f32 %v91, 1.442695
  %v94 = vpow.pop %v93
  %v95 = vmul.f32 %v92, 1.442695
  %v96 = vpow.pop %v95
  %v97 = vmul.f32 %v89, %v94
  %v98 = vmul.f32 %v90, %v96
  %v99 = vadd.f32 %v97, %v85
  %v100 = vadd.f32 %v98, %v88
  %101 = vst.msk [vmem:[#allocation3] sm:$0xff] %vm54, %v99
  %102 = vst.msk [vmem:[#allocation3 + $0x8] sm:$0xff] %vm54, %v100
  %103 = vst.msk [vmem:[#allocation2] sm:$0xff] %vm54, %v65
  %104 = vst.msk [vmem:[#allocation2 + $0x8] sm:$0xff] %vm54, %v66
  // Predicated region
  $region14: #{tpu_custom_call.1} parent=0 // pred_check
    %p105 = pneg %p13
  $region15: #{tpu_custom_call.1} parent=0 // pred_check_branch
    %107 = sbr.rel (%p105) target = $region17
  $region16: #{tpu_custom_call.1} parent=0 // pred_region
    %v108 = vld [vmem:[#allocation2] sm:$0xff]
    %v109 = vld [vmem:[#allocation2 + $0x8] sm:$0xff]
    %v110 = vld [vmem:[#allocation3] sm:$0xff]
    %v111 = vld [vmem:[#allocation3 + $0x8] sm:$0xff]
    %v112 = vlog2.pop %v110
    %v113 = vmul.f32 %v112, 0.6931472
    %v114 = vlog2.pop %v111
    %v115 = vmul.f32 %v114, 0.6931472
    %v116 = vadd.f32 %v108, %v113
    %v117 = vadd.f32 %v109, %v115
    %v118 = vld [vmem:[#allocation4] sm:$0xff]
    %v119 = vld [vmem:[#allocation4 + $0x8] sm:$0xff]
    %v120 = vsub.f32 %v116, %v118
    %v121 = vsub.f32 %v117, %v119
    %vm122 = vcmp.eq.s32.totalorder %v26, 0
    %vm123 = vcmp.eq.s32.totalorder %v27, 0
    %v124 = vsel %vm122, 0.0, %v120
    %v125 = vsel %vm123, 0.0, %v121
    %126 = vst.msk [vmem:[%s2] sm:$0xff] %vm54, %v124
    %127 = vst.msk [vmem:[%s2 + $0x8] sm:$0xff] %vm54, %v125
    %128 = vst.msk [vmem:[%s3] sm:$0xff] %vm54, %v116
    %129 = vst.msk [vmem:[%s3 + $0x8] sm:$0xff] %vm54, %v117
  $region17: #{tpu_custom_call.1} parent=0 // pred_fallthru
    _
  // Predicated region
  $region18: #{tpu_custom_call.1} parent=0 // pred_check
    _
  $region19: #{tpu_custom_call.1} parent=0 // pred_check_branch
    %131 = sbr.rel (0) target = $region21
  $region20: #{tpu_custom_call.1} parent=0 // pred_region
    _
  $region21: #{tpu_custom_call.1} parent=0 // pred_fallthru
    _
  // Predicated region
  $region22: #{tpu_custom_call.1} parent=0 // pred_check
    _
  $region23: #{tpu_custom_call.1} parent=0 // pred_check_branch
    %133 = sbr.rel (0) target = $region25
  $region24: #{tpu_custom_call.1} parent=0 // pred_region
    _
  $region25: #{tpu_custom_call.1} parent=0 // pred_fallthru
    _
  // Predicated region
  $region26: #{tpu_custom_call.1} parent=0 // pred_check
    _
  $region27: #{tpu_custom_call.1} parent=0 // pred_check_branch
    %135 = sbr.rel (0) target = $region29
  $region28: #{tpu_custom_call.1} parent=0 // pred_region
    _
  $region29: #{tpu_custom_call.1} parent=0 // pred_fallthru
    _
  // Predicated region
  $region30: #{tpu_custom_call.1} parent=0 // pred_check
    _
  $region31: #{tpu_custom_call.1} parent=0 // pred_check_branch
    %137 = sbr.rel (0) target = $region33
  $region32: #{tpu_custom_call.1} parent=0 // pred_region
    _
  $region33: #{tpu_custom_call.1} parent=0 // pred_fallthru
    _

</llo_original>
